<compile_context>
chip_gen: v7x
topology: tpu7x:2x2x1
jax: 0.10.0
libtpu: 0.0.40
codegen_flags: <defaults>
</compile_context>

<pallas_src>
import jax
import jax.numpy as jnp
from jax.experimental import pallas as pl
from jax.experimental.pallas import tpu as pltpu


# ---------------------------------------------------------------------------
# Kernels
# ---------------------------------------------------------------------------

def _timepreserve_kernel(x_ref, o_ref):
    # x_ref: (Br, W)   o_ref: (Br//2, W)
    hp = o_ref.shape[0]
    top = x_ref[pl.ds(0, hp, stride=2), :].astype(jnp.float32)
    bot = x_ref[pl.ds(1, hp, stride=2), :].astype(jnp.float32)
    o_ref[...] = ((top + bot) * 0.5).astype(o_ref.dtype)


def _make_half_kernel(w, wo):
    """'half' kernel: strided-sublane H-pool (VPU) + one 2-D W-pool matmul (MXU)."""

    def kernel(x_ref, o_ref):
        # x_ref: (Br, W)   o_ref: (Br//2, Wo)
        hp = o_ref.shape[0]

        # ---- H-pool (VPU): 0.5 * (rows[0::2] + rows[1::2]) -----------------
        top = x_ref[pl.ds(0, hp, stride=2), :].astype(jnp.float32)
        bot = x_ref[pl.ds(1, hp, stride=2), :].astype(jnp.float32)
        xh = (top + bot) * 0.5                              # (Br//2, W) f32

        # ---- W-pool as ONE large 2-D matmul: (Br//2, W) @ (W, Wo) ----------
        # Tiny pooling matrix generated in-kernel (no input stream / double
        # buffer).  For odd W the last output column takes weight 1.0 on
        # column W-1, matching the duplicated-last-column average.
        w_in = jax.lax.broadcasted_iota(jnp.int32, (w, wo), 0)
        w_out = jax.lax.broadcasted_iota(jnp.int32, (w, wo), 1)
        pwt = (jnp.where(w_in == 2 * w_out, 0.5, 0.0)
               + jnp.where(w_in == 2 * w_out + 1, 0.5, 0.0))
        if w % 2 != 0:
            pwt = pwt + jnp.where((w_in == w - 1) & (w_out == wo - 1), 0.5, 0.0)

        out = jax.lax.dot_general(
            xh, pwt,
            dimension_numbers=(((1,), (0,)), ((), ())),
            preferred_element_type=jnp.float32)             # (Br//2, Wo) f32
        o_ref[...] = out.astype(o_ref.dtype)

    return kernel


# ---------------------------------------------------------------------------
# Block sizing (generation-aware)
# ---------------------------------------------------------------------------

def _vmem_limits():
    """Return (vmem_limit_bytes, block_budget_bytes) sized per TPU generation.

    v5e / v6e (128 MiB physical VMEM) -> ~96 MiB scoped limit / ~48 MiB blocks.
    v7x       ( 64 MiB per TensorCore) -> ~48 MiB scoped limit / ~24 MiB blocks.
    """
    try:
        cap = int(pltpu.get_tpu_info().vmem_capacity_bytes)
    except Exception:
        cap = 64 * 1024 * 1024           # conservative fallback (v7x per-core)
    limit = min((cap * 3) // 4, 100 * 1024 * 1024)
    return limit, limit // 2


def _choose_block_rows(nr, w, wo, itemsize, budget, is_half):
    """Largest row block (multiple of 16) fitting the VMEM budget, capped so big
    problems get >=4 grid steps (>=2 per TensorCore on v7x, and DMA overlap
    everywhere)."""
    per_pair = (4 * w * itemsize         # 2 input rows, double-buffered
                + 2 * wo * itemsize      # 1 output row, double-buffered
                + 4 * w                  # f32 H-pool intermediate row
                + (4 * wo if is_half else 0))   # f32 matmul row before cast
    br = 2 * max(1, budget // max(per_pair, 1))
    if nr * w * itemsize >= (8 << 20):   # large input: per-step overhead is noise
        target = ((pl.cdiv(nr, 4) + 15) // 16) * 16
        br = min(br, target)
    if br >= nr:
        return int(nr)                   # single (or full-extent) block
    br = max(16, (br // 16) * 16)        # keep sublane alignment for in/out blocks
    return int(min(br, nr))


# ---------------------------------------------------------------------------
# Wrapper
# ---------------------------------------------------------------------------

def downsample(x, layer_type):
    """Pallas implementation of StyleTTS2 DownSample.forward (NCHW input)."""
    if layer_type == 'none':
        return x
    if layer_type not in ('timepreserve', 'half'):
        raise RuntimeError(
            'Got unexpected donwsampletype %s, expected is [none, timepreserve, half]'
            % layer_type)
    if not jnp.issubdtype(x.dtype, jnp.floating):
        raise TypeError('downsample expects a floating-point input, got %s' % x.dtype)

    N, C, H, W = x.shape
    dtype = x.dtype
    it = jnp.dtype(dtype).itemsize
    Ho = H // 2

    if H % 2 != 0:
        # avg_pool2d floor behavior drops the last row; trim it here so the
        # flattened even/odd row pairing stays uniform (rare path, one copy).
        x = x[:, :, :2 * Ho, :]

    NR = N * C * 2 * Ho                      # total input rows after trim

    if layer_type == 'timepreserve':
        Wo = W
        kernel = _timepreserve_kernel
        flops = NR * W
        is_half = False
    else:  # 'half'
        Wo = (W + 1) // 2
        kernel = _make_half_kernel(W, Wo)
        flops = NR * W + NR * W * Wo
        is_half = True

    vmem_limit, budget = _vmem_limits()
    br = _choose_block_rows(NR, W, Wo, it, budget, is_half)
    grid = (int(pl.cdiv(NR, br)),)

    xf = x.reshape(NR, W)                    # free: row-major metadata reshape

    out = pl.pallas_call(
        kernel,
        out_shape=jax.ShapeDtypeStruct((NR // 2, Wo), dtype),
        grid=grid,
        in_specs=[pl.BlockSpec((br, W), lambda i: (i, 0))],
        out_specs=pl.BlockSpec((br // 2, Wo), lambda i: (i, 0)),
        compiler_params=pltpu.CompilerParams(
            dimension_semantics=("parallel",),
            vmem_limit_bytes=int(vmem_limit)),
        cost_estimate=pl.CostEstimate(
            flops=int(flops), transcendentals=0,
            bytes_accessed=int(NR * W * it + (NR // 2) * Wo * it)),
    )(xf)
    # TODO(synk): for very small Wo the output stores are lane-masked; folding
    # (Ho, Wo) into one lane-dense dim would need an in-kernel relayout.
    return out.reshape(N, C, Ho, Wo)


# ---------------------------------------------------------------------------
# Pure-JAX reference & self-test
# ---------------------------------------------------------------------------

def _ref_downsample(x, layer_type):
    """Pure-JAX reference matching F.avg_pool2d semantics (floor on H, odd-W
    duplicate-last-column pad on the 'half' path)."""
    if layer_type == 'none':
        return x
    N, C, H, W = x.shape
    Ho = H // 2
    x = x[:, :, :2 * Ho, :]
    if layer_type == 'timepreserve':
        return x.reshape(N, C, Ho, 2, W).mean(axis=3)
    if W % 2 != 0:
        x = jnp.concatenate([x, x[..., -1:]], axis=-1)
        W = W + 1
    return x.reshape(N, C, Ho, 2, W // 2, 2).mean(axis=(3, 5))


if __name__ == "__main__":
    key = jax.random.PRNGKey(0)
    k1, k2, k3 = jax.random.split(key, 3)

    x      = jax.random.normal(k1, (2, 4, 16, 16), dtype=jnp.float32)   # even H/W
    x_oddw = jax.random.normal(k2, (2, 4, 16, 15), dtype=jnp.float32)   # odd W
    x_oddh = jax.random.normal(k3, (2, 4, 15, 16), dtype=jnp.float32)   # odd H

    cases = [
        ('none',         x,      (2, 4, 16, 16)),
        ('timepreserve', x,      (2, 4, 8, 16)),
        ('timepreserve', x_oddh, (2, 4, 7, 16)),
        ('half',         x,      (2, 4, 8, 8)),
        ('half',         x_oddw, (2, 4, 8, 8)),
        ('half',         x_oddh, (2, 4, 7, 8)),
    ]

    for layer_type, xin, expected_shape in cases:
        out = jax.block_until_ready(downsample(xin, layer_type))
        ref = _ref_downsample(xin, layer_type)
        assert out.shape == expected_shape, (layer_type, out.shape, expected_shape)
        assert jnp.allclose(out, ref, atol=1e-5, rtol=1e-5), layer_type

    # bf16 'half' path (kernel accumulates in f32).
    x_bf16 = x.astype(jnp.bfloat16)
    out_bf16 = jax.block_until_ready(downsample(x_bf16, 'half'))
    ref_bf16 = _ref_downsample(x_bf16.astype(jnp.float32), 'half')
    assert out_bf16.shape == (2, 4, 8, 8)
    assert jnp.allclose(out_bf16.astype(jnp.float32), ref_bf16, atol=2e-2, rtol=2e-2)

    print("KERNEL_OK")
</pallas_src>

<mosaic_0001>
module attributes {stable_mosaic.version = 11 : i64} {
  func.func @_timepreserve_kernel(%arg0: i32, %arg1: memref<128x16xf32, #tpu.memory_space<vmem>>, %arg2: memref<64x16xf32, #tpu.memory_space<vmem>>) attributes {dimension_semantics = [#tpu.dimension_semantics<parallel>], iteration_bounds = array<i64: 1>, scalar_prefetch = 0 : i64, scratch_operands = 0 : i64, tpu.core_type = #tpu.core_type<tc>, window_params = [{transform_indices = @transform_0, window_bounds = array<i64: 128, 16>}, {transform_indices = @transform_1, window_bounds = array<i64: 64, 16>}]} {
    %c0 = arith.constant 0 : index
    %c0_0 = arith.constant 0 : index
    %0 = tpu.strided_load %arg1[%c0, %c0_0] {strides = array<i32: 2, 1>} : memref<128x16xf32, #tpu.memory_space<vmem>>, vector<64x16xf32>
    %c1 = arith.constant 1 : index
    %c0_1 = arith.constant 0 : index
    %1 = tpu.strided_load %arg1[%c1, %c0_1] {strides = array<i32: 2, 1>} : memref<128x16xf32, #tpu.memory_space<vmem>>, vector<64x16xf32>
    %2 = arith.addf %0, %1 : vector<64x16xf32>
    %cst = arith.constant 5.000000e-01 : f32
    %3 = vector.broadcast %cst : f32 to vector<64x16xf32>
    %4 = arith.mulf %2, %3 : vector<64x16xf32>
    %c0_2 = arith.constant 0 : index
    %c0_3 = arith.constant 0 : index
    %5 = vector.load %arg2[%c0_2, %c0_3] : memref<64x16xf32, #tpu.memory_space<vmem>>, vector<64x16xf32>
    tpu.vector_store %arg2[%c0_2, %c0_3], %4 {strides = array<i32>} : memref<64x16xf32, #tpu.memory_space<vmem>>, vector<64x16xf32>,
    return
  }
  func.func @transform_0(%arg0: i32) -> (i32, i32) {
    %c0_i32 = arith.constant 0 : i32
    %c0_i32_0 = arith.constant 0 : i32
    return %arg0, %c0_i32 : i32, i32
  }
  func.func @transform_1(%arg0: i32) -> (i32, i32) {
    %c0_i32 = arith.constant 0 : i32
    %c0_i32_0 = arith.constant 0 : i32
    return %arg0, %c0_i32 : i32, i32
  }
}

</mosaic_0001>

<llo_original>
// kernel: tpu_custom_call.1
$region0: #{tpu_custom_call.1}
  #allocation0 [shape = 'u32[]', space=smem, size = 0x4, offset = 0x4, fixed_abs, tag = 'smem constant byte address 0x4 - core index']
  #allocation1 [shape = 'u32[144,128]{1,0:T(1,128)}', space=vmem, size = 0x12000, scoped, tag = 'internal scratch']
  %s0 = inlined_call_operand.vmem [shape: f32[128,16], index: 0, kind: input, shape index: {}]
  %s1 = inlined_call_operand.vmem [shape: f32[64,16], index: 1, kind: output, shape index: {}]
  %s2 = sld [smem:[#allocation0]]
  $region14: #{tpu_custom_call.1} parent=0
    _
  %s4 = ssub.s32 1, %s2
  %s5 = scalar_select 0, %s4, %s2
  // Predicated region
  $region2: #{tpu_custom_call.1} parent=0 // pred_check
    _
  $region3: #{tpu_custom_call.1} parent=0 // pred_check_branch
    %7 = sbr.rel (0) target = $region5
  $region4: #{tpu_custom_call.1} parent=0 // pred_region
    _
  $region5: #{tpu_custom_call.1} parent=0 // pred_fallthru
    _
  %v8 = vld [vmem:[%s0] ss:$2 sm:$0xff]
  %s9 = scalar_lea.vmem %s0, 16
  %v10 = vld [vmem:[%s9] ss:$2 sm:$0xff]
  %s11 = scalar_lea.vmem %s0, 32
  %v12 = vld [vmem:[%s11] ss:$2 sm:$0xff]
  %s13 = scalar_lea.vmem %s0, 48
  %v14 = vld [vmem:[%s13] ss:$2 sm:$0xff]
  %s15 = scalar_lea.vmem %s0, 64
  %v16 = vld [vmem:[%s15] ss:$2 sm:$0xff]
  %s17 = scalar_lea.vmem %s0, 80
  %v18 = vld [vmem:[%s17] ss:$2 sm:$0xff]
  %s19 = scalar_lea.vmem %s0, 96
  %v20 = vld [vmem:[%s19] ss:$2 sm:$0xff]
  %s21 = scalar_lea.vmem %s0, 112
  %v22 = vld [vmem:[%s21] ss:$2 sm:$0xff]
  %s23 = scalar_lea.vmem %s0, 1
  %v24 = vld [vmem:[%s23] ss:$2 sm:$0xff]
  %s25 = scalar_lea.vmem %s0, 17
  %v26 = vld [vmem:[%s25] ss:$2 sm:$0xff]
  %s27 = scalar_lea.vmem %s0, 33
  %v28 = vld [vmem:[%s27] ss:$2 sm:$0xff]
  %s29 = scalar_lea.vmem %s0, 49
  %v30 = vld [vmem:[%s29] ss:$2 sm:$0xff]
  %s31 = scalar_lea.vmem %s0, 65
  %v32 = vld [vmem:[%s31] ss:$2 sm:$0xff]
  %s33 = scalar_lea.vmem %s0, 81
  %v34 = vld [vmem:[%s33] ss:$2 sm:$0xff]
  %s35 = scalar_lea.vmem %s0, 97
  %v36 = vld [vmem:[%s35] ss:$2 sm:$0xff]
  %s37 = scalar_lea.vmem %s0, 113
  %v38 = vld [vmem:[%s37] ss:$2 sm:$0xff]
  %v39 = vadd.f32 %v8, %v24
  %v40 = vadd.f32 %v10, %v26
  %v41 = vadd.f32 %v12, %v28
  %v42 = vadd.f32 %v14, %v30
  %v43 = vadd.f32 %v16, %v32
  %v44 = vadd.f32 %v18, %v34
  %v45 = vadd.f32 %v20, %v36
  %v46 = vadd.f32 %v22, %v38
  %v47 = vmul.f32 %v39, 0.5
  %v48 = vmul.f32 %v40, 0.5
  %v49 = vmul.f32 %v41, 0.5
  %v50 = vmul.f32 %v42, 0.5
  %v51 = vmul.f32 %v43, 0.5
  %v52 = vmul.f32 %v44, 0.5
  %v53 = vmul.f32 %v45, 0.5
  %v54 = vmul.f32 %v46, 0.5
  %vm55 = vcmask 130048
  %56 = vst.msk [vmem:[%s1] sm:$0xff] %vm55, %v47
  %57 = vst.msk [vmem:[%s1 + $0x8] sm:$0xff] %vm55, %v48
  %58 = vst.msk [vmem:[%s1 + $0x10] sm:$0xff] %vm55, %v49
  %59 = vst.msk [vmem:[%s1 + $0x18] sm:$0xff] %vm55, %v50
  %60 = vst.msk [vmem:[%s1 + $0x20] sm:$0xff] %vm55, %v51
  %61 = vst.msk [vmem:[%s1 + $0x28] sm:$0xff] %vm55, %v52
  %62 = vst.msk [vmem:[%s1 + $0x30] sm:$0xff] %vm55, %v53
  %63 = vst.msk [vmem:[%s1 + $0x38] sm:$0xff] %vm55, %v54
  // Predicated region
  $region6: #{tpu_custom_call.1} parent=0 // pred_check
    _
  $region7: #{tpu_custom_call.1} parent=0 // pred_check_branch
    %65 = sbr.rel (0) target = $region9
  $region8: #{tpu_custom_call.1} parent=0 // pred_region
    _
  $region9: #{tpu_custom_call.1} parent=0 // pred_fallthru
    _
  // Predicated region
  $region10: #{tpu_custom_call.1} parent=0 // pred_check
    _
  $region11: #{tpu_custom_call.1} parent=0 // pred_check_branch
    %67 = sbr.rel (0) target = $region13
  $region12: #{tpu_custom_call.1} parent=0 // pred_region
    _
  $region13: #{tpu_custom_call.1} parent=0 // pred_fallthru
    _

</llo_original>
